<compile_context>
chip_gen: v6e
topology: v6e:2x2x1
jax: 0.10.0
libtpu: 0.0.40
codegen_flags: <defaults>
</compile_context>

<pallas_src>
import jax
import jax.numpy as jnp
from jax.experimental import pallas as pl
from jax.experimental.pallas import tpu as pltpu


def _pe_kernel(params_ref, out_ref):
    # params_ref: (2, E) — row 0: scale[j]  = inv_freq[j // 2]
    #                      row 1: parity[j] = 1.0 (j even) / 0.0 (j odd)
    # out_ref:    (TILE_S, E) tile of the positional encoding
    tile_s, emb = out_ref.shape
    base = pl.program_id(0) * tile_s
    pos = (base + jax.lax.broadcasted_iota(jnp.int32, (tile_s, emb), 0)
           ).astype(jnp.float32)
    # Exactly the same f32 argument the reference computes: pos * inv_freq.
    v = pos * params_ref[0:1, :]
    is_even = params_ref[1:2, :] != 0.0          # (1, E), broadcasts over rows
    out_ref[...] = jnp.where(is_even, jnp.sin(v), jnp.cos(v))


def make_inv_freq(embedding_size: int) -> jnp.ndarray:
    # Deterministic "buffer" init, identical to the PyTorch __init__.
    k = jnp.arange(0, embedding_size, 2, dtype=jnp.float32)
    return 1.0 / (10000.0 ** (k / embedding_size))


def _choose_tile_s(seq_len: int, emb: int) -> int:
    """~8 MiB output tiles, multiples of 8 rows; >= 2 tiles when possible (v7x)."""
    target_bytes = 8 * 1024 * 1024
    rows = max(8, (target_bytes // (emb * 4)) // 8 * 8)
    if rows < seq_len:
        return rows
    # Whole output fits in one target-size tile: still split into two tiles so
    # both v7x TensorCores get work (harmless on single-TC v5e/v6e).
    half_rows = (seq_len + 1) // 2
    half = -(-half_rows // 8) * 8                # round_up(ceil(seq_len/2), 8)
    if 8 <= half < seq_len:
        return half
    return seq_len                               # full-dim block is always legal


def positional_encoding_1d(x: jnp.ndarray, inv_freq: jnp.ndarray) -> jnp.ndarray:
    """Returns pe of shape (seq_len, embedding_size), float32."""
    if x.ndim != 3:
        raise RuntimeError("Input should have dims (batch_size, seq_len, embedding_size)")
    _, seq_len, emb = x.shape
    if emb % 2 != 0:
        # The PyTorch module also implicitly requires an even embedding size.
        raise ValueError("embedding_size must be even")

    # Tiny host-side parameter rows, merged into one (2, E) operand:
    scale = jnp.repeat(inv_freq.astype(jnp.float32), 2).reshape(1, emb)
    parity = ((jnp.arange(emb) % 2) == 0).astype(jnp.float32).reshape(1, emb)
    params = jnp.concatenate([scale, parity], axis=0)        # (2, E)

    tile_s = _choose_tile_s(seq_len, emb)
    grid = (pl.cdiv(seq_len, tile_s),)

    # TODO(synk): for emb < 128 a lane-dense (flattened) output layout would
    # avoid masked partial stores; skipped here — not worth the per-element
    # div/mod index math at these shapes.
    return pl.pallas_call(
        _pe_kernel,
        out_shape=jax.ShapeDtypeStruct((seq_len, emb), jnp.float32),
        grid=grid,
        in_specs=[pl.BlockSpec((2, emb), lambda i: (0, 0))],
        out_specs=pl.BlockSpec((tile_s, emb), lambda i: (i, 0)),
        compiler_params=pltpu.CompilerParams(
            dimension_semantics=("parallel",),
            vmem_limit_bytes=32 * 1024 * 1024,
        ),
        cost_estimate=pl.CostEstimate(
            flops=2 * seq_len * emb,
            transcendentals=2 * seq_len * emb,
            bytes_accessed=seq_len * emb * 4 + 2 * emb * 4,
        ),
    )(params)


def _reference_pe(x, inv_freq):
    # Pure-JAX reference mirroring the PyTorch forward exactly.
    _, seq_len, emb = x.shape
    position = jnp.arange(seq_len, dtype=jnp.float32)
    pos_emb = jnp.einsum("i,j->ij", position, inv_freq)
    pe = jnp.zeros((seq_len, emb), dtype=jnp.float32)
    pe = pe.at[:, 0::2].set(jnp.sin(pos_emb))
    pe = pe.at[:, 1::2].set(jnp.cos(pos_emb))
    return pe


if __name__ == "__main__":
    batch, seq_len, embedding_size = 2, 8, 32

    key = jax.random.PRNGKey(0)
    x = jax.random.normal(key, (batch, seq_len, embedding_size), dtype=jnp.float32)
    inv_freq = make_inv_freq(embedding_size)

    pe = jax.block_until_ready(positional_encoding_1d(x, inv_freq))
    ref = _reference_pe(x, inv_freq)
    assert pe.shape == (seq_len, embedding_size)
    assert pe.dtype == jnp.float32
    assert jnp.allclose(pe, ref, atol=1e-5, rtol=1e-5)

    # Larger, non-divisible shape exercises multi-tile + ragged last block.
    # Tolerance is 1e-4 here: for phase arguments up to ~1000 the f32 input ulp
    # is ~6e-5, so bit-parity of sin/cos between two correct implementations is
    # not a meaningful 1e-5 target; 1e-4 bounds the honest error.
    x_big = jnp.zeros((1, 1000 + 7, 256), dtype=jnp.float32)
    inv_freq_big = make_inv_freq(256)
    pe_big = jax.block_until_ready(positional_encoding_1d(x_big, inv_freq_big))
    ref_big = _reference_pe(x_big, inv_freq_big)
    assert jnp.allclose(pe_big, ref_big, atol=1e-4, rtol=1e-4)

    # TODO(synk): the PyTorch module's `self.cache` memoization is host-side
    # Python state, not a device op; callers can cache the returned array.
    print("KERNEL_OK")
</pallas_src>

<mosaic_0001>
module attributes {stable_mosaic.version = 11 : i64} {
  func.func @_pe_kernel(%arg0: i32, %arg1: memref<2x32xf32, #tpu.memory_space<vmem>>, %arg2: memref<8x32xf32, #tpu.memory_space<vmem>>) attributes {dimension_semantics = [#tpu.dimension_semantics<parallel>], iteration_bounds = array<i64: 1>, scalar_prefetch = 0 : i64, scratch_operands = 0 : i64, tpu.core_type = #tpu.core_type<tc>, window_params = [{pipeline_mode = #tpu.pipeline_mode<synchronous>, transform_indices = @transform_0, window_bounds = array<i64: 2, 32>}, {transform_indices = @transform_1, window_bounds = array<i64: 8, 32>}]} {
    %c8_i32 = arith.constant 8 : i32
    %0 = arith.muli %arg0, %c8_i32 : i32
    %1 = tpu.iota {dimensions = array<i32: 0>} : vector<8x32xi32>
    %2 = vector.broadcast %0 : i32 to vector<8x32xi32>
    %3 = arith.addi %2, %1 : vector<8x32xi32>
    %4 = arith.sitofp %3 : vector<8x32xi32> to vector<8x32xf32>
    %c0 = arith.constant 0 : index
    %c0_0 = arith.constant 0 : index
    %5 = vector.load %arg1[%c0, %c0_0] : memref<2x32xf32, #tpu.memory_space<vmem>>, vector<1x32xf32>
    %6 = vector.broadcast %5 : vector<1x32xf32> to vector<8x32xf32>
    %7 = arith.mulf %4, %6 : vector<8x32xf32>
    %c1 = arith.constant 1 : index
    %c0_1 = arith.constant 0 : index
    %8 = vector.load %arg1[%c1, %c0_1] : memref<2x32xf32, #tpu.memory_space<vmem>>, vector<1x32xf32>
    %cst = arith.constant 0.000000e+00 : f32
    %9 = vector.broadcast %cst : f32 to vector<1x32xf32>
    %10 = arith.cmpf one, %8, %9 : vector<1x32xf32>
    %11 = math.sin %7 : vector<8x32xf32>
    %12 = math.cos %7 : vector<8x32xf32>
    %13 = vector.shape_cast %10 : vector<1x32xi1> to vector<1x32xi1>
    %14 = vector.broadcast %13 : vector<1x32xi1> to vector<8x32xi1>
    %15 = arith.select %14, %11, %12 : vector<8x32xi1>, vector<8x32xf32>
    %c0_2 = arith.constant 0 : index
    %c0_3 = arith.constant 0 : index
    %16 = vector.load %arg2[%c0_2, %c0_3] : memref<8x32xf32, #tpu.memory_space<vmem>>, vector<8x32xf32>
    tpu.vector_store %arg2[%c0_2, %c0_3], %15 {strides = array<i32>} : memref<8x32xf32, #tpu.memory_space<vmem>>, vector<8x32xf32>,
    return
  }
  func.func @transform_0(%arg0: i32) -> (i32, i32) {
    %c0_i32 = arith.constant 0 : i32
    %c0_i32_0 = arith.constant 0 : i32
    %c0_i32_1 = arith.constant 0 : i32
    return %c0_i32, %c0_i32_0 : i32, i32
  }
  func.func @transform_1(%arg0: i32) -> (i32, i32) {
    %c0_i32 = arith.constant 0 : i32
    %c0_i32_0 = arith.constant 0 : i32
    return %arg0, %c0_i32 : i32, i32
  }
}

</mosaic_0001>

<llo_original>
// kernel: tpu_custom_call.1
$region0: #{tpu_custom_call.1}
  #allocation0 [shape = 'u32[]', space=smem, size = 0x4, offset = 0x4, fixed_abs, tag = 'smem constant byte address 0x4 - core index']
  #allocation1 [shape = 'u32[144,128]{1,0:T(1,128)}', space=vmem, size = 0x12000, scoped, tag = 'internal scratch']
  %s0 = inlined_call_operand.hbm [shape: f32[2,32], index: 0, kind: input, shape index: {}]
  %s1 = inlined_call_operand.hbm [shape: f32[8,32], index: 1, kind: output, shape index: {}]
  %s2 = sld [smem:[#allocation0]]
  $region18: #{tpu_custom_call.1} parent=0
    _
  %s4 = ssub.s32 1, %s2
  %s5 = scalar_select 0, %s4, %s2
  $region1: #{tpu_custom_call.1} parent=0
    #allocation2 [shape = 'u8[1024]{0}', space=vmem, size = 0x400, scoped, tag = 'input window, operand 0, single buffered']
    #allocation3 [shape = 's32[1]{0}', space=sflag, size = 0x4, scoped, tag = 'scoped memory for tpu_custom_call.1']
    #allocation4 [shape = 's32[1]{0}', space=sflag, size = 0x4, scoped, tag = 'scoped memory for tpu_custom_call.1']
    #allocation5 [shape = 'u8[4096]{0}', space=vmem, size = 0x1000, scoped, tag = 'output window, operand 0, single buffered']
    %6 = vsyncpa [#allocation3], 0
    %7 = vsyncpa [#allocation4], 0
    // Predicated region
    $region2: #{tpu_custom_call.1} parent=1 // pred_check
      _
    $region3: #{tpu_custom_call.1} parent=1 // pred_check_branch
      %9 = sbr.rel (0) target = $region5
    $region4: #{tpu_custom_call.1} parent=1 // pred_region
      %s11 = ssub.s32 32, 32
      %12 = vsyncadd [#allocation3], %s11
      %s14 = sshll.u32 [#allocation2], 4
      %s15 = int_to_ptr.vmem [resolvable:$true] %s14
      %17 = dma.hbm_to_vmem [thread:$0]  %s0, 32, %s15, [#allocation3]
    $region5: #{tpu_custom_call.1} parent=1 // pred_fallthru
      _
    // Predicated region
    $region6: #{tpu_custom_call.1} parent=1 // pred_check
      _
    $region7: #{tpu_custom_call.1} parent=1 // pred_check_branch
      %19 = sbr.rel (0) target = $region9
    $region8: #{tpu_custom_call.1} parent=1 // pred_region
      %20 = dma.done [#allocation3], 32
    $region9: #{tpu_custom_call.1} parent=1 // pred_fallthru
      _
    %s21 = smul.u32 0, 8
    %v22 = vlaneseq
    %v23 = vshrl.u32 %v22, 7
    %v24 = vstv %s21
    %v25 = vadd.s32 %v24, %v23
    %v26 = vcvt.s32.f32 %v25
    %v27 = vld [vmem:[#allocation2] sm:$0x1]
    %v28 = vlaneseq
    %v29 = vshrl.u32 %v28, 7
    %v30 = vsub.s32 0, %v29
    %v31 = vrot.slane %v27, %v30
    %v32 = vmul.f32 %v26, %v31
    %v33 = vld [vmem:[#allocation2 + $0x1] sm:$0x1]
    %vm34 = vcmp.ne.f32.partialorder %v33, 0.0
    %v35 = vand.u32 2147483647, %v32
    %vm36 = vcmp.le.f32.partialorder %v35, 0.7853982
    %vm37 = vcmp.lt.s32.totalorder %v32, 0
    %v38 = vand.u32 %v32, 2139095040
    %v39 = vshrl.u32 %v38, 23
    %v40 = vsub.s32 %v39, 127
    %v41 = vand.u32 2147483647, %v32
    %v42 = vand.u32 %v41, 8388607
    %v43 = vor.u32 %v42, 8388608
    %v44 = vsub.s32 0, %v43
    %v45 = vadd.s32 %v40, 1
    %vm46 = vcmp.gt.s32.totalorder %v45, 0
    %v47 = vsel %vm46, %v45, 0
    %v48 = vshrl.u32 %v47, 5
    %v49 = vand.u32 %v47, 31
    %v50 = vsub.s32 32, %v49
    %v51 = vshrl.u32 683565275, %v50
    %v52 = vshll.u32 683565275, %v49
    %v53 = vshrl.u32 2475754826, %v50
    %v54 = vor.u32 %v52, %v53
    %v55 = vshll.u32 2475754826, %v49
    %v56 = vshrl.u32 2131351028, %v50
    %v57 = vor.u32 %v55, %v56
    %v58 = vshll.u32 2131351028, %v49
    %v59 = vshrl.u32 2102212464, %v50
    %v60 = vor.u32 %v58, %v59
    %v61 = vshll.u32 2102212464, %v49
    %v62 = vshrl.u32 920167782, %v50
    %v63 = vor.u32 %v61, %v62
    %v64 = vshll.u32 920167782, %v49
    %v65 = vshrl.u32 1326507024, %v50
    %v66 = vor.u32 %v64, %v65
    %vm67 = vcmp.lt.s32.totalorder %v48, 1
    %vm68 = vcmp.lt.s32.totalorder %v48, 2
    %vm69 = vcmp.lt.s32.totalorder %v48, 3
    %vm70 = vcmp.lt.s32.totalorder %v48, 4
    %v71 = vsel %vm67, %v51, %v54
    %v72 = vsel %vm70, %v60, 2102212464
    %v73 = vsel %vm69, %v57, %v72
    %v74 = vsel %vm68, %v71, %v73
    %v75 = vsel %vm67, %v54, %v57
    %v76 = vsel %vm70, %v63, 920167782
    %v77 = vsel %vm69, %v60, %v76
    %v78 = vsel %vm68, %v75, %v77
    %v79 = vsel %vm67, %v57, %v60
    %v80 = vsel %vm70, %v66, 1326507024
    %v81 = vsel %vm69, %v63, %v80
    %v82 = vsel %vm68, %v79, %v81
    %v83 = vshll.u32 %v43, 8
    %v84 = vmul.u32.u64.compose %v83, %v82
    %v85 = vextract.low.u32 %v84
    %v86 = vextract.high.u32 %v84
    %v87 = vmul.u32.u64.compose %v83, %v78
    %v88 = vextract.low.u32 %v87
    %v89 = vextract.high.u32 %v87
    %v90 = vmul.u32 %v83, %v74
    %v91 = vadd.s32 %v86, %v88
    %vm92 = vc.u32 %v86, %v88
    %v93 = vadd.s32 %v89, 1
    %v94 = vsel %vm92, %v93, %v89
    %v95 = vadd.s32 %v90, %v94
    %v96 = vadd.s32 %v95, 536870912
    %v97 = vshrl.u32 %v96, 30
    %v98 = vshll.u32 %v97, 30
    %v99 = vsub.s32 %v95, %v98
    %vm100 = vcmp.lt.s32.totalorder %v99, 0
    %v101 = vsub.s32 0, %v99
    %v102 = vsel %vm100, %v101, %v99
    %v103 = vclz %v102
    %v104 = vsub.s32 %v103, 2
    %vm105 = vcmp.gt.s32.totalorder 0, %v104
    %v106 = vsel %vm105, 0, %v104
    %v107 = vsub.s32 32, %v106
    %v108 = vshll.u32 %v99, %v106
    %v109 = vshrl.u32 %v91, %v107
    %v110 = vor.u32 %v108, %v109
    %v111 = vsub.s32 4294967266, %v106
    %v112 = vadd.s32 %v111, 127
    %v113 = vshll.u32 %v112, 23
    %v114 = vor.u32 4788187, %v113
    %v115 = vand.u32 2147483647, %v114
    %v117 = vcvt.s32.f32 %v110
    %v118 = vmul.f32 %v117, %v115
    %v119 = vxor.u32 %v118, 2147483648
    %v120 = vsel %vm37, %v119, %v118
    %v121 = vsub.s32 4, %v97
    %v122 = vsel %vm37, %v121, %v97
    %v123 = vsel %vm36, %v32, %v120
    %v124 = vsel %vm36, 0, %v122
    %v125 = vcosq.f32.pop %v123
    %v126 = vsinq.f32.pop %v123
    %vm127 = vweird.f32 %v32
    %v128 = vadd.s32 %v124, 3
    %v129 = vand.u32 %v128, 3
    %vm130 = vcmp.lt.s32.totalorder %v129, 2
    %vm131 = vcmp.eq.s32.totalorder %v129, 0
    %v132 = vxor.u32 %v126, 2147483648
    %v133 = vsel %vm131, %v125, %v132
    %vm134 = vcmp.eq.s32.totalorder %v129, 2
    %v135 = vxor.u32 %v125, 2147483648
    %v136 = vsel %vm134, %v135, %v126
    %v137 = vsel %vm130, %v133, %v136
    %v138 = vsel %vm127, nan, %v137
    %v139 = vand.u32 2147483647, %v32
    %vm140 = vcmp.le.f32.partialorder %v139, 0.7853982
    %vm141 = vcmp.lt.s32.totalorder %v32, 0
    %v142 = vand.u32 %v32, 2139095040
    %v143 = vshrl.u32 %v142, 23
    %v144 = vsub.s32 %v143, 127
    %v145 = vand.u32 2147483647, %v32
    %v146 = vand.u32 %v145, 8388607
    %v147 = vor.u32 %v146, 8388608
    %v148 = vsub.s32 0, %v147
    %v149 = vadd.s32 %v144, 1
    %vm150 = vcmp.gt.s32.totalorder %v149, 0
    %v151 = vsel %vm150, %v149, 0
    %v152 = vshrl.u32 %v151, 5
    %v153 = vand.u32 %v151, 31
    %v154 = vsub.s32 32, %v153
    %v155 = vshrl.u32 683565275, %v154
    %v156 = vshll.u32 683565275, %v153
    %v157 = vshrl.u32 2475754826, %v154
    %v158 = vor.u32 %v156, %v157
    %v159 = vshll.u32 2475754826, %v153
    %v160 = vshrl.u32 2131351028, %v154
    %v161 = vor.u32 %v159, %v160
    %v162 = vshll.u32 2131351028, %v153
    %v163 = vshrl.u32 2102212464, %v154
    %v164 = vor.u32 %v162, %v163
    %v165 = vshll.u32 2102212464, %v153
    %v166 = vshrl.u32 920167782, %v154
    %v167 = vor.u32 %v165, %v166
    %v168 = vshll.u32 920167782, %v153
    %v169 = vshrl.u32 1326507024, %v154
    %v170 = vor.u32 %v168, %v169
    %vm171 = vcmp.lt.s32.totalorder %v152, 1
    %vm172 = vcmp.lt.s32.totalorder %v152, 2
    %vm173 = vcmp.lt.s32.totalorder %v152, 3
    %vm174 = vcmp.lt.s32.totalorder %v152, 4
    %v175 = vsel %vm171, %v155, %v158
    %v176 = vsel %vm174, %v164, 2102212464
    %v177 = vsel %vm173, %v161, %v176
    %v178 = vsel %vm172, %v175, %v177
    %v179 = vsel %vm171, %v158, %v161
    %v180 = vsel %vm174, %v167, 920167782
    %v181 = vsel %vm173, %v164, %v180
    %v182 = vsel %vm172, %v179, %v181
    %v183 = vsel %vm171, %v161, %v164
    %v184 = vsel %vm174, %v170, 1326507024
    %v185 = vsel %vm173, %v167, %v184
    %v186 = vsel %vm172, %v183, %v185
    %v187 = vshll.u32 %v147, 8
    %v188 = vmul.u32.u64.compose %v187, %v186
    %v189 = vextract.low.u32 %v188
    %v190 = vextract.high.u32 %v188
    %v191 = vmul.u32.u64.compose %v187, %v182
    %v192 = vextract.low.u32 %v191
    %v193 = vextract.high.u32 %v191
    %v194 = vmul.u32 %v187, %v178
    %v195 = vadd.s32 %v190, %v192
    %vm196 = vc.u32 %v190, %v192
    %v197 = vadd.s32 %v193, 1
    %v198 = vsel %vm196, %v197, %v193
    %v199 = vadd.s32 %v194, %v198
    %v200 = vadd.s32 %v199, 536870912
    %v201 = vshrl.u32 %v200, 30
    %v202 = vshll.u32 %v201, 30
    %v203 = vsub.s32 %v199, %v202
    %vm204 = vcmp.lt.s32.totalorder %v203, 0
    %v205 = vsub.s32 0, %v203
    %v206 = vsel %vm204, %v205, %v203
    %v207 = vclz %v206
    %v208 = vsub.s32 %v207, 2
    %vm209 = vcmp.gt.s32.totalorder 0, %v208
    %v210 = vsel %vm209, 0, %v208
    %v211 = vsub.s32 32, %v210
    %v212 = vshll.u32 %v203, %v210
    %v213 = vshrl.u32 %v195, %v211
    %v214 = vor.u32 %v212, %v213
    %v215 = vsub.s32 4294967266, %v210
    %v216 = vadd.s32 %v215, 127
    %v217 = vshll.u32 %v216, 23
    %v218 = vor.u32 4788187, %v217
    %v219 = vand.u32 2147483647, %v218
    %v221 = vcvt.s32.f32 %v214
    %v222 = vmul.f32 %v221, %v219
    %v223 = vxor.u32 %v222, 2147483648
    %v224 = vsel %vm141, %v223, %v222
    %v225 = vsub.s32 4, %v201
    %v226 = vsel %vm141, %v225, %v201
    %v227 = vsel %vm140, %v32, %v224
    %v228 = vsel %vm140, 0, %v226
    %v229 = vcosq.f32.pop %v227
    %v230 = vsinq.f32.pop %v227
    %vm231 = vweird.f32 %v32
    %v232 = vand.u32 %v228, 3
    %vm233 = vcmp.lt.s32.totalorder %v232, 2
    %vm234 = vcmp.eq.s32.totalorder %v232, 0
    %v235 = vxor.u32 %v230, 2147483648
    %v236 = vsel %vm234, %v229, %v235
    %vm237 = vcmp.eq.s32.totalorder %v232, 2
    %v238 = vxor.u32 %v229, 2147483648
    %v239 = vsel %vm237, %v238, %v230
    %v240 = vsel %vm233, %v236, %v239
    %v241 = vsel %vm231, nan, %v240
    %v242 = vsel %vm34, 1, 0
    %v243 = vlaneseq
    %v244 = vshrl.u32 %v243, 7
    %v245 = vsub.s32 0, %v244
    %v246 = vrot.slane %v242, %v245
    %vm247 = vcmp.eq.s32.totalorder %v246, 1
    %v248 = vsel %vm247, %v138, %v241
    %vm249 = vcmask 261120
    %250 = vst.msk [vmem:[#allocation5] sm:$0xff] %vm249, %v248
    // Predicated region
    $region10: #{tpu_custom_call.1} parent=1 // pred_check
      _
    $region11: #{tpu_custom_call.1} parent=1 // pred_check_branch
      %252 = sbr.rel (0) target = $region13
    $region12: #{tpu_custom_call.1} parent=1 // pred_region
      %s254 = ssub.s32 128, 128
      %255 = vsyncadd [#allocation4], %s254
      %s257 = sshll.u32 [#allocation5], 4
      %s258 = int_to_ptr.vmem [resolvable:$true] %s257
      %260 = dma.vmem_to_hbm [thread:$0]  %s258, 128, %s1, [#allocation4]
    $region13: #{tpu_custom_call.1} parent=1 // pred_fallthru
      _
    // Predicated region
    $region14: #{tpu_custom_call.1} parent=1 // pred_check
      _
    $region15: #{tpu_custom_call.1} parent=1 // pred_check_branch
      %262 = sbr.rel (0) target = $region17
    $region16: #{tpu_custom_call.1} parent=1 // pred_region
      %263 = dma.done [#allocation4], 128
    $region17: #{tpu_custom_call.1} parent=1 // pred_fallthru
      _
    %264 = vsyncpa [#allocation3], 1
    %265 = vsyncpa [#allocation4], 1

</llo_original>
